<compile_context>
chip_gen: v5e
topology: v5e:2x2
jax: 0.10.0
libtpu: 0.0.40
codegen_flags: <defaults>
</compile_context>

<pallas_src>
import functools

import jax
import jax.numpy as jnp
from jax.experimental import pallas as pl
from jax.experimental.pallas import tpu as pltpu

LANES = 128
DEFAULT_TILE_ROWS = 4096  # 4096 x 128 x f32 = 2 MiB per block


def _log_sigmoid(x):
    """Stable log-sigmoid: 2 transcendentals (exp, log1p); rest is VALU."""
    return jnp.minimum(x, 0.0) - jnp.log1p(jnp.exp(-jnp.abs(x)))


def _adv_partial_kernel(x_ref, out_ref, *, tile_rows, last_valid_rows):
    """Per-block partial sum of log_sigmoid(x), folded to an (8, 128) vreg."""
    x = x_ref[...].astype(jnp.float32)  # (tile_rows, LANES), accumulate in f32
    val = _log_sigmoid(x)

    def fold(v):
        # (tile_rows, 128) -> (tile_rows//8, 8, 128) splits the sublane index
        # on its native 8-row tiling (layout no-op); the axis-0 sum is pure
        # VPU vreg adds -- no XLU -- and its <= tile_rows/8-deep add chain is
        # negligible next to the per-element EUP work.
        return v.reshape(tile_rows // 8, 8, LANES).sum(axis=0)

    if last_valid_rows == tile_rows:
        # Grid divides the slab exactly: no masking anywhere.
        out_ref[...] = fold(val)
    else:
        i = pl.program_id(0)
        last = pl.num_programs(0) - 1

        @pl.when(i < last)
        def _():
            out_ref[...] = fold(val)

        @pl.when(i == last)
        def _():
            # Only the final (partial) block pays for the row mask.  Keep it a
            # select (jnp.where), NOT multiply-by-mask: boundary rows hold
            # unspecified data whose log-sigmoid may be NaN/Inf.
            row_ids = jax.lax.broadcasted_iota(jnp.int32, (tile_rows, LANES), 0)
            out_ref[...] = fold(jnp.where(row_ids < last_valid_rows, val, 0.0))


def _adv_partial_sum(slab):
    """Sum of log_sigmoid over a lane-dense (rows, 128) slab via Pallas."""
    rows = slab.shape[0]
    itemsize = jnp.dtype(slab.dtype).itemsize
    sublane = max(8, 32 // itemsize)  # 8 rows f32, 16 bf16, 32 int8/fp8

    # Big blocks, clamped (to a packing-aligned sublane multiple) for small inputs.
    tile_rows = min(DEFAULT_TILE_ROWS, ((rows + sublane - 1) // sublane) * sublane)
    grid = pl.cdiv(rows, tile_rows)
    last_valid_rows = rows - (grid - 1) * tile_rows

    n_elems = rows * LANES
    cost = pl.CostEstimate(
        flops=4 * n_elems,               # min/abs/neg/adds on the VPU
        transcendentals=2 * n_elems,     # exp + log1p per element
        bytes_accessed=n_elems * itemsize + grid * 8 * LANES * 4,
    )

    kernel = functools.partial(
        _adv_partial_kernel,
        tile_rows=tile_rows,
        last_valid_rows=last_valid_rows,
    )

    partials = pl.pallas_call(
        kernel,
        out_shape=jax.ShapeDtypeStruct((grid * 8, LANES), jnp.float32),
        grid_spec=pltpu.PrefetchScalarGridSpec(
            num_scalar_prefetch=0,
            grid=(grid,),
            in_specs=[
                pl.BlockSpec((tile_rows, LANES), lambda i: (i, 0)),
            ],
            # Each grid step owns its own lane-dense (8, 128) output block,
            # so the axis is truly parallel (and trivially disjoint for a
            # future per-core split).
            out_specs=pl.BlockSpec((8, LANES), lambda i: (i, 0)),
        ),
        compiler_params=pltpu.CompilerParams(
            dimension_semantics=("parallel",),
        ),
        cost_estimate=cost,
    )(slab)

    return jnp.sum(partials, dtype=jnp.float32)  # tiny follow-up reduction


def adv_loss(p_y, size=256, weight=1.0):
    """Pallas TPU implementation of AdvLoss.forward."""
    n = p_y.size
    flat = jnp.ravel(p_y)  # free reshape of a contiguous array, no HBM copy

    rows = n // LANES
    rem = n % LANES

    total = jnp.float32(0.0)
    if rows > 0:
        if rem:
            # TODO(synk): for non-lane-aligned sizes this prefix slice may
            # still materialize one HBM copy; a fully zero-copy version needs
            # a 1-D block + in-kernel retiling, not worth it for this loss.
            aligned = flat[: rows * LANES]
        else:
            aligned = flat  # zero-copy fast path
        slab = aligned.reshape(rows, LANES)
        total = total + _adv_partial_sum(slab)
    if rem:
        # Tiny ragged tail (< 128 elements): exact PyTorch formula in plain JAX.
        tail = flat[rows * LANES:].astype(jnp.float32)
        total = total + jnp.sum(jnp.log(jax.nn.sigmoid(tail) + 1e-9))

    mean = total / jnp.float32(n)
    loss = (-weight * 12.0 * size * size) * mean
    return loss


def adv_loss_ref(p_y, size=256, weight=1.0):
    """Pure-JAX reference matching the PyTorch semantics."""
    mean = jnp.mean(jnp.log(jax.nn.sigmoid(p_y.astype(jnp.float32)) + 1e-9))
    return -weight * 12.0 * size * size * mean


if __name__ == "__main__":
    key = jax.random.PRNGKey(0)
    # Discriminator output p_y, small NCHW-like shape.
    p_y = jax.random.normal(key, (2, 4, 16, 16), dtype=jnp.float32)

    size = 16  # consistent with the spatial extent above
    weight = 1.0

    out = adv_loss(p_y, size=size, weight=weight)
    out = jax.block_until_ready(out)

    ref = adv_loss_ref(p_y, size=size, weight=weight)
    assert jnp.allclose(out, ref, rtol=1e-5, atol=1e-3), (out, ref)

    print("KERNEL_OK")
</pallas_src>

<mosaic_0001>
module attributes {stable_mosaic.version = 11 : i64} {
  func.func @_adv_partial_kernel(%arg0: i32, %arg1: memref<16x128xf32, #tpu.memory_space<vmem>>, %arg2: memref<8x128xf32, #tpu.memory_space<vmem>>) attributes {dimension_semantics = [#tpu.dimension_semantics<parallel>], iteration_bounds = array<i64: 1>, scalar_prefetch = 0 : i64, scratch_operands = 0 : i64, tpu.core_type = #tpu.core_type<tc>, window_params = [{transform_indices = @transform_0, window_bounds = array<i64: 16, 128>}, {transform_indices = @transform_1, window_bounds = array<i64: 8, 128>}]} {
    %c0 = arith.constant 0 : index
    %c0_0 = arith.constant 0 : index
    %0 = vector.load %arg1[%c0, %c0_0] : memref<16x128xf32, #tpu.memory_space<vmem>>, vector<16x128xf32>
    %cst = arith.constant 0.000000e+00 : f32
    %1 = vector.broadcast %cst : f32 to vector<16x128xf32>
    %2 = arith.minimumf %0, %1 : vector<16x128xf32>
    %3 = math.absf %0 : vector<16x128xf32>
    %cst_1 = arith.constant 0.000000e+00 : f32
    %4 = vector.broadcast %cst_1 : f32 to vector<16x128xf32>
    %5 = arith.subf %4, %3 : vector<16x128xf32>
    %6 = math.exp %5 : vector<16x128xf32>
    %7 = math.log1p %6 : vector<16x128xf32>
    %8 = arith.subf %2, %7 : vector<16x128xf32>
    %9 = vector.shape_cast %8 : vector<16x128xf32> to vector<2x8x128xf32>
    %cst_2 = arith.constant dense<0.000000e+00> : vector<8x128xf32>
    %10 = vector.multi_reduction <add>, %9, %cst_2 [0] : vector<2x8x128xf32> to vector<8x128xf32>
    %c0_3 = arith.constant 0 : index
    %c0_4 = arith.constant 0 : index
    %11 = vector.load %arg2[%c0_3, %c0_4] : memref<8x128xf32, #tpu.memory_space<vmem>>, vector<8x128xf32>
    tpu.vector_store %arg2[%c0_3, %c0_4], %10 {strides = array<i32>} : memref<8x128xf32, #tpu.memory_space<vmem>>, vector<8x128xf32>,
    return
  }
  func.func @transform_0(%arg0: i32) -> (i32, i32) {
    %c0_i32 = arith.constant 0 : i32
    %c0_i32_0 = arith.constant 0 : i32
    return %arg0, %c0_i32 : i32, i32
  }
  func.func @transform_1(%arg0: i32) -> (i32, i32) {
    %c0_i32 = arith.constant 0 : i32
    %c0_i32_0 = arith.constant 0 : i32
    return %arg0, %c0_i32 : i32, i32
  }
}

</mosaic_0001>

<llo_original>
// kernel: tpu_custom_call.1
$region0: #{tpu_custom_call.1}
  #allocation0 [shape = 'u32[]', space=smem, size = 0x4, offset = 0x4, fixed_abs, tag = 'smem constant byte address 0x4 - core index']
  #allocation1 [shape = 'u32[72,128]{1,0:T(1,128)}', space=vmem, size = 0x9000, scoped, tag = 'internal scratch']
  %s0 = inlined_call_operand.hbm [shape: f32[16,128], index: 0, kind: input, shape index: {}]
  %s1 = inlined_call_operand.hbm [shape: f32[8,128], index: 1, kind: output, shape index: {}]
  %s2 = sld [smem:[#allocation0]]
  $region18: #{tpu_custom_call.1} parent=0
    _
  %s4 = ssub.s32 1, %s2
  %s5 = scalar_select 0, %s4, %s2
  $region1: #{tpu_custom_call.1} parent=0
    #allocation2 [shape = 'u8[8192]{0}', space=vmem, size = 0x2000, scoped, tag = 'input window, operand 0, single buffered']
    #allocation3 [shape = 's32[1]{0}', space=sflag, size = 0x4, scoped, tag = 'scoped memory for tpu_custom_call.1']
    #allocation4 [shape = 's32[1]{0}', space=sflag, size = 0x4, scoped, tag = 'scoped memory for tpu_custom_call.1']
    #allocation5 [shape = 'u8[4096]{0}', space=vmem, size = 0x1000, scoped, tag = 'output window, operand 0, single buffered']
    %6 = vsyncpa [#allocation3], 0
    %7 = vsyncpa [#allocation4], 0
    // Predicated region
    $region2: #{tpu_custom_call.1} parent=1 // pred_check
      _
    $region3: #{tpu_custom_call.1} parent=1 // pred_check_branch
      %9 = sbr.rel (0) target = $region5
    $region4: #{tpu_custom_call.1} parent=1 // pred_region
      %11 = vsyncadd [#allocation3], 0
      %s12 = sshll.u32 %s0, 4
      %s13 = int_to_ptr.hbm [resolvable:$true] %s12
      %s14 = sshll.u32 [#allocation2], 4
      %s15 = int_to_ptr.vmem [resolvable:$true] %s14
      %20 = dma.hbm_to_vmem [thread:$0]  %s13, 256, %s15, [#allocation3], 128, 128, 8
    $region5: #{tpu_custom_call.1} parent=1 // pred_fallthru
      _
    // Predicated region
    $region6: #{tpu_custom_call.1} parent=1 // pred_check
      _
    $region7: #{tpu_custom_call.1} parent=1 // pred_check_branch
      %22 = sbr.rel (0) target = $region9
    $region8: #{tpu_custom_call.1} parent=1 // pred_region
      %24 = dma.done [#allocation3], 256
    $region9: #{tpu_custom_call.1} parent=1 // pred_fallthru
      _
    %v25 = vld [vmem:[#allocation2] sm:$0xff]
    %v26 = vld [vmem:[#allocation2 + $0x8] sm:$0xff]
    %v27 = vmin.f32 %v25, 0.0
    %v28 = vmin.f32 %v26, 0.0
    %v29 = vand.u32 2147483647, %v25
    %v30 = vand.u32 2147483647, %v26
    %v31 = vsub.f32 0.0, %v29
    %v32 = vsub.f32 0.0, %v30
    %v33 = vmul.f32 %v31, 1.442695
    %v34 = vpow.pop %v33
    %v35 = vmul.f32 %v32, 1.442695
    %v36 = vpow.pop %v35
    %v37 = vadd.f32 %v34, 1.0
    %v38 = vlog2.pop %v37
    %v39 = vmul.f32 %v38, 0.6931472
    %v40 = vmul.f32 -0.5, %v34
    %v41 = vadd.f32 %v40, 1.0
    %v42 = vmul.f32 %v41, %v34
    %v43 = vand.u32 2147483647, %v34
    %vm44 = vcmp.lt.f32.partialorder %v43, 0.0004427343
    %v45 = vsel %vm44, %v42, %v39
    %v46 = vadd.f32 %v36, 1.0
    %v47 = vlog2.pop %v46
    %v48 = vmul.f32 %v47, 0.6931472
    %v49 = vmul.f32 -0.5, %v36
    %v50 = vadd.f32 %v49, 1.0
    %v51 = vmul.f32 %v50, %v36
    %v52 = vand.u32 2147483647, %v36
    %vm53 = vcmp.lt.f32.partialorder %v52, 0.0004427343
    %v54 = vsel %vm53, %v51, %v48
    %v55 = vsub.f32 %v27, %v45
    %v56 = vsub.f32 %v28, %v54
    %v57 = vadd.f32 %v55, %v56
    %58 = vst [vmem:[#allocation5] sm:$0xff] %v57
    // Predicated region
    $region10: #{tpu_custom_call.1} parent=1 // pred_check
      _
    $region11: #{tpu_custom_call.1} parent=1 // pred_check_branch
      %60 = sbr.rel (0) target = $region13
    $region12: #{tpu_custom_call.1} parent=1 // pred_region
      %62 = vsyncadd [#allocation4], 0
      %s64 = sshll.u32 [#allocation5], 4
      %s65 = int_to_ptr.vmem [resolvable:$true] %s64
      %s66 = sshll.u32 %s1, 4
      %s67 = int_to_ptr.hbm [resolvable:$true] %s66
      %69 = dma.vmem_to_hbm [thread:$0]  %s65, 128, %s67, [#allocation4]
    $region13: #{tpu_custom_call.1} parent=1 // pred_fallthru
      _
    // Predicated region
    $region14: #{tpu_custom_call.1} parent=1 // pred_check
      _
    $region15: #{tpu_custom_call.1} parent=1 // pred_check_branch
      %71 = sbr.rel (0) target = $region17
    $region16: #{tpu_custom_call.1} parent=1 // pred_region
      %73 = dma.done [#allocation4], 128
    $region17: #{tpu_custom_call.1} parent=1 // pred_fallthru
      _
    %74 = vsyncpa [#allocation3], 1
    %75 = vsyncpa [#allocation4], 1

</llo_original>
